<compile_context>
chip_gen: v6e
topology: v6e:2x2x1
jax: 0.10.0
libtpu: 0.0.40
codegen_flags: <defaults>
</compile_context>

<pallas_src>
import functools

import jax
import jax.numpy as jnp
from jax.experimental import pallas as pl
from jax.experimental.pallas import tpu as pltpu

_SUBLANE = 8


def _round_up(x, m):
    return ((x + m - 1) // m) * m


def critic_kernel(s_ref, a_ref, w1_ref, b1_ref, w2_ref, wa_ref, b2a_ref,
                  wq_ref, bq_ref, o_ref, *, matmul_dtype):
    # fc1 + relu (state branch).  MXU dot, f32 accumulation; bias/relu on the VPU in f32.
    h1 = jnp.dot(s_ref[...], w1_ref[...], preferred_element_type=jnp.float32)
    h1 = jnp.maximum(h1 + b1_ref[...], 0.0)

    # fc2(state) + action_value(action): two accumulating dots with a pre-summed bias
    # (b2 + ba).  Same contraction work as the fused/concatenated form, but no
    # (tb, f1 + n_actions) VMEM copy (saves vst/vld slots, matters on v5e's 1 vst slot).
    h2 = (jnp.dot(h1.astype(matmul_dtype), w2_ref[...],
                  preferred_element_type=jnp.float32)
          + jnp.dot(a_ref[...], wa_ref[...],
                    preferred_element_type=jnp.float32)
          + b2a_ref[...])
    sav = jnp.maximum(h2, 0.0)

    # q head (output width 1): VPU multiply + lane reduction instead of a 1-column matmul.
    q = jnp.sum(sav * wq_ref[...], axis=-1, keepdims=True) + bq_ref[0, 0]
    o_ref[...] = q.astype(o_ref.dtype)


def critic_forward(state, action, params, *, block_b=1024, matmul_dtype=jnp.float32):
    """Forward pass of the DDPG CriticNetwork as a single Pallas kernel.

    matmul_dtype=jnp.bfloat16 is recommended on v5e/v6e/v7x (MXU is bf16-native;
    accumulation stays f32).  The f32 default keeps exact parity with the reference.
    """
    (w1, b1, w2, b2, wa, ba, wq, bq) = params
    B, input_dims = state.shape
    n_actions = action.shape[1]
    fc1_dims = w1.shape[1]
    fc2_dims = w2.shape[1]

    # Batch tile: cap at block_b, then re-derive from ceil(B / n_tiles) (sublane
    # aligned) so the last tile is not mostly padding.  For v7x prefer batches that
    # give >= 2 tiles so both TensorCores get work.
    tb_cap = min(block_b, _round_up(B, _SUBLANE))
    n_tiles = -(-B // tb_cap)
    tb = _round_up(-(-B // n_tiles), _SUBLANE)
    b_p = n_tiles * tb

    # Pad only the batch axis (padded rows produce junk q values that are sliced off);
    # feature dims stay unpadded — block last dim == full array dim is legal.
    s_p = jnp.pad(state, ((0, b_p - B), (0, 0))).astype(matmul_dtype)
    a_p = jnp.pad(action, ((0, b_p - B), (0, 0))).astype(matmul_dtype)

    # Grid-invariant parameters, pre-cast once in the wrapper.
    w1_c = w1.astype(matmul_dtype)
    w2_c = w2.astype(matmul_dtype)
    wa_c = wa.astype(matmul_dtype)
    b1_r = b1.reshape(1, fc1_dims).astype(jnp.float32)
    b2a_r = (b2 + ba).reshape(1, fc2_dims).astype(jnp.float32)   # pre-summed bias
    wq_r = wq.reshape(1, fc2_dims).astype(jnp.float32)           # q weight as a lane row (VPU use)
    bq_s = bq.reshape(1, 1).astype(jnp.float32)                  # scalar -> SMEM

    kernel = functools.partial(critic_kernel, matmul_dtype=matmul_dtype)
    # Resident (constant-block-index) param specs.  On real DDPG dims (fc1~400,
    # fc2~300) these could additionally be single-buffered via
    # pipeline_mode=pl.Buffered(1) to halve their VMEM footprint.
    resident = lambda arr: pl.BlockSpec(arr.shape, lambda i: (0,) * arr.ndim)

    out = pl.pallas_call(
        kernel,
        out_shape=jax.ShapeDtypeStruct((b_p, 1), jnp.float32),
        grid_spec=pltpu.PrefetchScalarGridSpec(
            num_scalar_prefetch=0,
            grid=(n_tiles,),
            in_specs=[
                pl.BlockSpec((tb, input_dims), lambda i: (i, 0)),   # state, batch-tiled
                pl.BlockSpec((tb, n_actions), lambda i: (i, 0)),    # action, batch-tiled
                resident(w1_c), resident(b1_r),
                resident(w2_c), resident(wa_c), resident(b2a_r),
                resident(wq_r),
                pl.BlockSpec(memory_space=pltpu.MemorySpace.SMEM),  # bq scalar
            ],
            # Width-1 output: 4 B/row HBM write, no 128-lane broadcast slab.
            out_specs=pl.BlockSpec((tb, 1), lambda i: (i, 0)),
        ),
        compiler_params=pltpu.CompilerParams(
            # Batch tiles are independent.  On v7x, pltpu.CORE_PARALLEL here splits
            # tiles across both TensorCores; "parallel" is the portable default.
            # For tb >= 2048 with real fc dims on v5e, also set vmem_limit_bytes.
            dimension_semantics=("parallel",)),
    )(s_p, a_p, w1_c, b1_r, w2_c, wa_c, b2a_r, wq_r, bq_s)

    return out[:B]


def init_params(key, input_dims, fc1_dims, fc2_dims, n_actions):
    """Deterministic init mirroring the PyTorch module's uniform ranges.

    PyTorch stores Linear weights as (out, in); here we store (in, out).
    f = 1/sqrt(weight.size(0)) which in PyTorch is 1/sqrt(out_features) for
    fc1/fc2/action_value, and 0.003 for q.
    """
    ks = jax.random.split(key, 8)
    u = lambda k, shape, f: jax.random.uniform(k, shape, jnp.float32, -f, f)

    f1 = 1.0 / jnp.sqrt(fc1_dims)
    w1 = u(ks[0], (input_dims, fc1_dims), f1)
    b1 = u(ks[1], (1, fc1_dims), f1)

    f2 = 1.0 / jnp.sqrt(fc2_dims)
    w2 = u(ks[2], (fc1_dims, fc2_dims), f2)
    b2 = u(ks[3], (1, fc2_dims), f2)

    f4 = 1.0 / jnp.sqrt(fc2_dims)
    wa = u(ks[4], (n_actions, fc2_dims), f4)
    ba = u(ks[5], (1, fc2_dims), f4)

    f3 = 0.003
    wq = u(ks[6], (fc2_dims, 1), f3)
    bq = u(ks[7], (1, 1), f3)

    return (w1, b1, w2, b2, wa, ba, wq, bq)


def critic_forward_ref(state, action, params):
    (w1, b1, w2, b2, wa, ba, wq, bq) = params
    sv = jnp.maximum(state @ w1 + b1, 0.0)
    sv = sv @ w2 + b2
    av = action @ wa + ba
    sav = jnp.maximum(sv + av, 0.0)
    return sav @ wq + bq


if __name__ == "__main__":
    B, input_dims, fc1_dims, fc2_dims, n_actions = 8, 16, 32, 32, 4

    key = jax.random.PRNGKey(0)
    k_state, k_action, k_params = jax.random.split(key, 3)

    state = jax.random.normal(k_state, (B, input_dims), jnp.float32)
    action = jax.random.normal(k_action, (B, n_actions), jnp.float32)
    params = init_params(k_params, input_dims, fc1_dims, fc2_dims, n_actions)

    out = jax.block_until_ready(critic_forward(state, action, params))

    ref = critic_forward_ref(state, action, params)
    assert out.shape == (B, 1), out.shape
    assert jnp.allclose(out, ref, atol=1e-5, rtol=1e-5), (out, ref)

    print("KERNEL_OK")
</pallas_src>

<mosaic_0001>
module attributes {stable_mosaic.version = 11 : i64} {
  func.func @critic_kernel(%arg0: i32, %arg1: memref<8x16xf32, #tpu.memory_space<vmem>>, %arg2: memref<8x4xf32, #tpu.memory_space<vmem>>, %arg3: memref<16x32xf32, #tpu.memory_space<vmem>>, %arg4: memref<1x32xf32, #tpu.memory_space<vmem>>, %arg5: memref<32x32xf32, #tpu.memory_space<vmem>>, %arg6: memref<4x32xf32, #tpu.memory_space<vmem>>, %arg7: memref<1x32xf32, #tpu.memory_space<vmem>>, %arg8: memref<1x32xf32, #tpu.memory_space<vmem>>, %arg9: memref<1x1xf32, #tpu.memory_space<smem>>, %arg10: memref<8x1xf32, #tpu.memory_space<vmem>>) attributes {dimension_semantics = [#tpu.dimension_semantics<parallel>], iteration_bounds = array<i64: 1>, scalar_prefetch = 0 : i64, scratch_operands = 0 : i64, tpu.core_type = #tpu.core_type<tc>, window_params = [{transform_indices = @transform_0, window_bounds = array<i64: 8, 16>}, {transform_indices = @transform_1, window_bounds = array<i64: 8, 4>}, {pipeline_mode = #tpu.pipeline_mode<synchronous>, transform_indices = @transform_2, window_bounds = array<i64: 16, 32>}, {pipeline_mode = #tpu.pipeline_mode<synchronous>, transform_indices = @transform_3, window_bounds = array<i64: 1, 32>}, {pipeline_mode = #tpu.pipeline_mode<synchronous>, transform_indices = @transform_4, window_bounds = array<i64: 32, 32>}, {pipeline_mode = #tpu.pipeline_mode<synchronous>, transform_indices = @transform_5, window_bounds = array<i64: 4, 32>}, {pipeline_mode = #tpu.pipeline_mode<synchronous>, transform_indices = @transform_6, window_bounds = array<i64: 1, 32>}, {pipeline_mode = #tpu.pipeline_mode<synchronous>, transform_indices = @transform_7, window_bounds = array<i64: 1, 32>}, {transform_indices = @transform_8, window_bounds = array<i64: 1, 1>}, {transform_indices = @transform_9, window_bounds = array<i64: 8, 1>}]} {
    %c0 = arith.constant 0 : index
    %c0_0 = arith.constant 0 : index
    %0 = vector.load %arg1[%c0, %c0_0] : memref<8x16xf32, #tpu.memory_space<vmem>>, vector<8x16xf32>
    %c0_1 = arith.constant 0 : index
    %c0_2 = arith.constant 0 : index
    %1 = vector.load %arg3[%c0_1, %c0_2] : memref<16x32xf32, #tpu.memory_space<vmem>>, vector<16x32xf32>
    %cst = arith.constant dense<0.000000e+00> : vector<8x32xf32>
    %2 = tpu.matmul %0, %1, %cst {dimension_numbers = #tpu.dot_dimension_numbers<[1], [0], [0], [1], [0, 0, 1, 1], [], []>} : vector<8x16xf32>, vector<16x32xf32>, vector<8x32xf32> -> vector<8x32xf32>
    %c0_3 = arith.constant 0 : index
    %c0_4 = arith.constant 0 : index
    %3 = vector.load %arg4[%c0_3, %c0_4] : memref<1x32xf32, #tpu.memory_space<vmem>>, vector<1x32xf32>
    %4 = vector.broadcast %3 : vector<1x32xf32> to vector<8x32xf32>
    %5 = arith.addf %2, %4 : vector<8x32xf32>
    %cst_5 = arith.constant 0.000000e+00 : f32
    %6 = vector.broadcast %cst_5 : f32 to vector<8x32xf32>
    %7 = arith.maximumf %5, %6 : vector<8x32xf32>
    %c0_6 = arith.constant 0 : index
    %c0_7 = arith.constant 0 : index
    %8 = vector.load %arg5[%c0_6, %c0_7] : memref<32x32xf32, #tpu.memory_space<vmem>>, vector<32x32xf32>
    %cst_8 = arith.constant dense<0.000000e+00> : vector<8x32xf32>
    %9 = tpu.matmul %7, %8, %cst_8 {dimension_numbers = #tpu.dot_dimension_numbers<[1], [0], [0], [1], [0, 0, 1, 1], [], []>} : vector<8x32xf32>, vector<32x32xf32>, vector<8x32xf32> -> vector<8x32xf32>
    %c0_9 = arith.constant 0 : index
    %c0_10 = arith.constant 0 : index
    %10 = vector.load %arg2[%c0_9, %c0_10] : memref<8x4xf32, #tpu.memory_space<vmem>>, vector<8x4xf32>
    %c0_11 = arith.constant 0 : index
    %c0_12 = arith.constant 0 : index
    %11 = vector.load %arg6[%c0_11, %c0_12] : memref<4x32xf32, #tpu.memory_space<vmem>>, vector<4x32xf32>
    %cst_13 = arith.constant dense<0.000000e+00> : vector<8x32xf32>
    %12 = tpu.matmul %10, %11, %cst_13 {dimension_numbers = #tpu.dot_dimension_numbers<[1], [0], [0], [1], [0, 0, 1, 1], [], []>} : vector<8x4xf32>, vector<4x32xf32>, vector<8x32xf32> -> vector<8x32xf32>
    %13 = arith.addf %9, %12 : vector<8x32xf32>
    %c0_14 = arith.constant 0 : index
    %c0_15 = arith.constant 0 : index
    %14 = vector.load %arg7[%c0_14, %c0_15] : memref<1x32xf32, #tpu.memory_space<vmem>>, vector<1x32xf32>
    %15 = vector.broadcast %14 : vector<1x32xf32> to vector<8x32xf32>
    %16 = arith.addf %13, %15 : vector<8x32xf32>
    %cst_16 = arith.constant 0.000000e+00 : f32
    %17 = vector.broadcast %cst_16 : f32 to vector<8x32xf32>
    %18 = arith.maximumf %16, %17 : vector<8x32xf32>
    %c0_17 = arith.constant 0 : index
    %c0_18 = arith.constant 0 : index
    %19 = vector.load %arg8[%c0_17, %c0_18] : memref<1x32xf32, #tpu.memory_space<vmem>>, vector<1x32xf32>
    %20 = vector.broadcast %19 : vector<1x32xf32> to vector<8x32xf32>
    %21 = arith.mulf %18, %20 : vector<8x32xf32>
    %cst_19 = arith.constant dense<0.000000e+00> : vector<8xf32>
    %22 = vector.multi_reduction <add>, %21, %cst_19 [1] : vector<8x32xf32> to vector<8xf32>
    %23 = vector.shape_cast %22 : vector<8xf32> to vector<8x1xf32>
    %c0_20 = arith.constant 0 : index
    %c0_21 = arith.constant 0 : index
    %24 = memref.load %arg9[%c0_20, %c0_21] : memref<1x1xf32, #tpu.memory_space<smem>>
    %25 = vector.broadcast %24 : f32 to vector<8x1xf32>
    %26 = arith.addf %23, %25 : vector<8x1xf32>
    %c0_22 = arith.constant 0 : index
    %c0_23 = arith.constant 0 : index
    %27 = vector.load %arg10[%c0_22, %c0_23] : memref<8x1xf32, #tpu.memory_space<vmem>>, vector<8x1xf32>
    tpu.vector_store %arg10[%c0_22, %c0_23], %26 {strides = array<i32>} : memref<8x1xf32, #tpu.memory_space<vmem>>, vector<8x1xf32>,
    return
  }
  func.func @transform_0(%arg0: i32) -> (i32, i32) {
    %c0_i32 = arith.constant 0 : i32
    %c0_i32_0 = arith.constant 0 : i32
    return %arg0, %c0_i32 : i32, i32
  }
  func.func @transform_1(%arg0: i32) -> (i32, i32) {
    %c0_i32 = arith.constant 0 : i32
    %c0_i32_0 = arith.constant 0 : i32
    return %arg0, %c0_i32 : i32, i32
  }
  func.func @transform_2(%arg0: i32) -> (i32, i32) {
    %c0_i32 = arith.constant 0 : i32
    %c0_i32_0 = arith.constant 0 : i32
    %c0_i32_1 = arith.constant 0 : i32
    return %c0_i32, %c0_i32_0 : i32, i32
  }
  func.func @transform_3(%arg0: i32) -> (i32, i32) {
    %c0_i32 = arith.constant 0 : i32
    %c0_i32_0 = arith.constant 0 : i32
    %c0_i32_1 = arith.constant 0 : i32
    return %c0_i32, %c0_i32_0 : i32, i32
  }
  func.func @transform_4(%arg0: i32) -> (i32, i32) {
    %c0_i32 = arith.constant 0 : i32
    %c0_i32_0 = arith.constant 0 : i32
    %c0_i32_1 = arith.constant 0 : i32
    return %c0_i32, %c0_i32_0 : i32, i32
  }
  func.func @transform_5(%arg0: i32) -> (i32, i32) {
    %c0_i32 = arith.constant 0 : i32
    %c0_i32_0 = arith.constant 0 : i32
    %c0_i32_1 = arith.constant 0 : i32
    return %c0_i32, %c0_i32_0 : i32, i32
  }
  func.func @transform_6(%arg0: i32) -> (i32, i32) {
    %c0_i32 = arith.constant 0 : i32
    %c0_i32_0 = arith.constant 0 : i32
    %c0_i32_1 = arith.constant 0 : i32
    return %c0_i32, %c0_i32_0 : i32, i32
  }
  func.func @transform_7(%arg0: i32) -> (i32, i32) {
    %c0_i32 = arith.constant 0 : i32
    %c0_i32_0 = arith.constant 0 : i32
    %c0_i32_1 = arith.constant 0 : i32
    return %c0_i32, %c0_i32_0 : i32, i32
  }
  func.func @transform_8(%arg0: i32) -> (i32, i32) {
    %c0_i32 = arith.constant 0 : i32
    %c0_i32_0 = arith.constant 0 : i32
    %c0_i32_1 = arith.constant 0 : i32
    return %c0_i32, %c0_i32_0 : i32, i32
  }
  func.func @transform_9(%arg0: i32) -> (i32, i32) {
    %c0_i32 = arith.constant 0 : i32
    %c0_i32_0 = arith.constant 0 : i32
    return %arg0, %c0_i32 : i32, i32
  }
}

</mosaic_0001>

<llo_original>
// kernel: tpu_custom_call.1
$region0: #{tpu_custom_call.1}
  #allocation0 [shape = 'u32[]', space=smem, size = 0x4, offset = 0x4, fixed_abs, tag = 'smem constant byte address 0x4 - core index']
  #allocation1 [shape = 'u32[144,128]{1,0:T(1,128)}', space=vmem, size = 0x12000, scoped, tag = 'internal scratch']
  #allocation2 [shape = 'f32[1,1]{1,0:T(1,128)S(6)}', space=smem, size = 0x200, scoped, tag = 'scoped memory for tpu_custom_call.1']
  %s0 = inlined_call_operand.hbm [shape: f32[8,16], index: 0, kind: input, shape index: {}]
  %s1 = inlined_call_operand.vmem [shape: f32[8,4], index: 1, kind: input, shape index: {}]
  %s2 = inlined_call_operand.vmem [shape: f32[16,32], index: 2, kind: input, shape index: {}]
  %s3 = inlined_call_operand.vmem [shape: f32[1,32], index: 3, kind: input, shape index: {}]
  %s4 = inlined_call_operand.hbm [shape: f32[32,32], index: 4, kind: input, shape index: {}]
  %s5 = inlined_call_operand.vmem [shape: f32[4,32], index: 5, kind: input, shape index: {}]
  %s6 = inlined_call_operand.vmem [shape: f32[1,32], index: 6, kind: input, shape index: {}]
  %s7 = inlined_call_operand.vmem [shape: f32[1,32], index: 7, kind: input, shape index: {}]
  %s8 = inlined_call_operand.<no memory space> [shape: f32[1,1], index: 8, kind: input, shape index: {}]
  %s9 = inlined_call_operand.vmem [shape: f32[8,1], index: 9, kind: output, shape index: {}]
  %s10 = sld [smem:[#allocation0]]
  $region54: #{tpu_custom_call.1} parent=0
    _
  %s12 = ssub.s32 1, %s10
  %s13 = scalar_select 0, %s12, %s10
  %14 = sst [smem:[#allocation2]] %s8
  $region1: #{tpu_custom_call.1} parent=0
    #allocation3 [shape = 'u8[4096]{0}', space=vmem, size = 0x1000, scoped, tag = 'input window, operand 0, single buffered']
    #allocation4 [shape = 's32[1]{0}', space=sflag, size = 0x4, scoped, tag = 'scoped memory for tpu_custom_call.1']
    #allocation5 [shape = 'u8[16384]{0}', space=vmem, size = 0x4000, scoped, tag = 'input window, operand 4, single buffered']
    #allocation6 [shape = 's32[1]{0}', space=sflag, size = 0x4, scoped, tag = 'scoped memory for tpu_custom_call.1']
    %15 = vsyncpa [#allocation4], 0
    %16 = vsyncpa [#allocation6], 0
    // Predicated region
    $region2: #{tpu_custom_call.1} parent=1 // pred_check
      _
    $region3: #{tpu_custom_call.1} parent=1 // pred_check_branch
      %18 = sbr.rel (0) target = $region5
    $region4: #{tpu_custom_call.1} parent=1 // pred_region
      %s20 = ssub.s32 128, 128
      %21 = vsyncadd [#allocation4], %s20
      %s23 = sshll.u32 [#allocation3], 4
      %s24 = int_to_ptr.vmem [resolvable:$true] %s23
      %26 = dma.hbm_to_vmem [thread:$0]  %s0, 128, %s24, [#allocation4]
    $region5: #{tpu_custom_call.1} parent=1 // pred_fallthru
      _
    // Predicated region
    $region6: #{tpu_custom_call.1} parent=1 // pred_check
      _
    $region7: #{tpu_custom_call.1} parent=1 // pred_check_branch
      %28 = sbr.rel (0) target = $region9
    $region8: #{tpu_custom_call.1} parent=1 // pred_region
      _
    $region9: #{tpu_custom_call.1} parent=1 // pred_fallthru
      _
    // Predicated region
    $region10: #{tpu_custom_call.1} parent=1 // pred_check
      _
    $region11: #{tpu_custom_call.1} parent=1 // pred_check_branch
      %30 = sbr.rel (0) target = $region13
    $region12: #{tpu_custom_call.1} parent=1 // pred_region
      _
    $region13: #{tpu_custom_call.1} parent=1 // pred_fallthru
      _
    // Predicated region
    $region14: #{tpu_custom_call.1} parent=1 // pred_check
      _
    $region15: #{tpu_custom_call.1} parent=1 // pred_check_branch
      %32 = sbr.rel (0) target = $region17
    $region16: #{tpu_custom_call.1} parent=1 // pred_region
      _
    $region17: #{tpu_custom_call.1} parent=1 // pred_fallthru
      _
    // Predicated region
    $region18: #{tpu_custom_call.1} parent=1 // pred_check
      _
    $region19: #{tpu_custom_call.1} parent=1 // pred_check_branch
      %34 = sbr.rel (0) target = $region21
    $region20: #{tpu_custom_call.1} parent=1 // pred_region
      %s36 = ssub.s32 512, 512
      %37 = vsyncadd [#allocation6], %s36
      %s38 = sshll.u32 [#allocation5], 4
      %s39 = int_to_ptr.vmem [resolvable:$true] %s38
      %44 = dma.hbm_to_vmem [thread:$0]  %s4, 512, %s39, [#allocation6], 128, 128, 8
    $region21: #{tpu_custom_call.1} parent=1 // pred_fallthru
      _
    // Predicated region
    $region22: #{tpu_custom_call.1} parent=1 // pred_check
      _
    $region23: #{tpu_custom_call.1} parent=1 // pred_check_branch
      %46 = sbr.rel (0) target = $region25
    $region24: #{tpu_custom_call.1} parent=1 // pred_region
      _
    $region25: #{tpu_custom_call.1} parent=1 // pred_fallthru
      _
    // Predicated region
    $region26: #{tpu_custom_call.1} parent=1 // pred_check
      _
    $region27: #{tpu_custom_call.1} parent=1 // pred_check_branch
      %48 = sbr.rel (0) target = $region29
    $region28: #{tpu_custom_call.1} parent=1 // pred_region
      _
    $region29: #{tpu_custom_call.1} parent=1 // pred_fallthru
      _
    // Predicated region
    $region30: #{tpu_custom_call.1} parent=1 // pred_check
      _
    $region31: #{tpu_custom_call.1} parent=1 // pred_check_branch
      %50 = sbr.rel (0) target = $region33
    $region32: #{tpu_custom_call.1} parent=1 // pred_region
      _
    $region33: #{tpu_custom_call.1} parent=1 // pred_fallthru
      _
    // Predicated region
    $region34: #{tpu_custom_call.1} parent=1 // pred_check
      _
    $region35: #{tpu_custom_call.1} parent=1 // pred_check_branch
      %52 = sbr.rel (0) target = $region37
    $region36: #{tpu_custom_call.1} parent=1 // pred_region
      _
    $region37: #{tpu_custom_call.1} parent=1 // pred_fallthru
      _
    // Predicated region
    $region38: #{tpu_custom_call.1} parent=1 // pred_check
      _
    $region39: #{tpu_custom_call.1} parent=1 // pred_check_branch
      %54 = sbr.rel (0) target = $region41
    $region40: #{tpu_custom_call.1} parent=1 // pred_region
      %55 = dma.done [#allocation4], 128
    $region41: #{tpu_custom_call.1} parent=1 // pred_fallthru
      _
    // Predicated region
    $region42: #{tpu_custom_call.1} parent=1 // pred_check
      _
    $region43: #{tpu_custom_call.1} parent=1 // pred_check_branch
      %57 = sbr.rel (0) target = $region45
    $region44: #{tpu_custom_call.1} parent=1 // pred_region
      %58 = dma.done [#allocation6], 512
    $region45: #{tpu_custom_call.1} parent=1 // pred_fallthru
      _
    %v59 = vld [vmem:[#allocation3] sm:$0xff]
    %v60 = vld [vmem:[%s2] sm:$0xff]
    %v61 = vld [vmem:[%s2 + $0x8] sm:$0xff]
    %v62 = vld [vmem:[%s3] sm:$0x1]
    %v64 = vlaneseq
    %v65 = vshrl.u32 %v64, 7
    %v66 = vsub.s32 0, %v65
    %v67 = vrot.slane %v62, %v66
    %vm69 = vcmask 130048
    %v71 = vsel %vm69, %v59, 0
    %73 = vmatprep.subr.mxu0 0.0
    %74 = vmatpush1.msra.mxu0 0.0
    %75 = vmatprep.subr.mxu0 0.0
    %76 = vmatpush1.msra.mxu0 0.0
    %77 = vmatprep.subr.mxu0 0.0
    %78 = vmatpush1.msra.mxu0 0.0
    %79 = vmatprep.subr.mxu0 0.0
    %80 = vmatpush1.msra.mxu0 0.0
    %81 = vmatprep.subr.mxu0 0.0
    %82 = vmatpush1.msra.mxu0 0.0
    %83 = vmatprep.subr.mxu0 0.0
    %84 = vmatpush1.msra.mxu0 0.0
    %85 = vmatprep.subr.mxu0 0.0
    %86 = vmatpush1.msra.mxu0 0.0
    %87 = vmatprep.subr.mxu0 0.0
    %88 = vmatpush1.msra.mxu0 0.0
    %89 = vmatprep.subr.mxu0 0.0
    %90 = vmatpush1.msra.mxu0 0.0
    %91 = vmatprep.subr.mxu0 0.0
    %92 = vmatpush1.msra.mxu0 0.0
    %93 = vmatprep.subr.mxu0 0.0
    %94 = vmatpush1.msra.mxu0 0.0
    %95 = vmatprep.subr.mxu0 0.0
    %96 = vmatpush1.msra.mxu0 0.0
    %97 = vmatprep.subr.mxu0 0.0
    %98 = vmatpush1.msra.mxu0 0.0
    %99 = vmatprep.subr.mxu0 0.0
    %100 = vmatpush1.msra.mxu0 0.0
    %101 = vmatprep.subr.mxu0 0.0
    %102 = vmatpush1.msra.mxu0 %v61
    %103 = vmatprep.subr.mxu0 0.0
    %104 = vmatpush1.msra.mxu0 %v60
    %105 = vmatprep.subr.mxu0 0.0
    %106 = vmatpush2.msra.mxu0 0.0
    %107 = vmatprep.subr.mxu0 0.0
    %108 = vmatpush2.msra.mxu0 0.0
    %109 = vmatprep.subr.mxu0 0.0
    %110 = vmatpush2.msra.mxu0 0.0
    %111 = vmatprep.subr.mxu0 0.0
    %112 = vmatpush2.msra.mxu0 0.0
    %113 = vmatprep.subr.mxu0 0.0
    %114 = vmatpush2.msra.mxu0 0.0
    %115 = vmatprep.subr.mxu0 0.0
    %116 = vmatpush2.msra.mxu0 0.0
    %117 = vmatprep.subr.mxu0 0.0
    %118 = vmatpush2.msra.mxu0 0.0
    %119 = vmatprep.subr.mxu0 0.0
    %120 = vmatpush2.msra.mxu0 0.0
    %121 = vmatprep.subr.mxu0 0.0
    %122 = vmatpush2.msra.mxu0 0.0
    %123 = vmatprep.subr.mxu0 0.0
    %124 = vmatpush2.msra.mxu0 0.0
    %125 = vmatprep.subr.mxu0 0.0
    %126 = vmatpush2.msra.mxu0 0.0
    %127 = vmatprep.subr.mxu0 0.0
    %128 = vmatpush2.msra.mxu0 0.0
    %129 = vmatprep.subr.mxu0 0.0
    %130 = vmatpush2.msra.mxu0 0.0
    %131 = vmatprep.subr.mxu0 0.0
    %132 = vmatpush2.msra.mxu0 0.0
    %133 = vmatprep.subr.mxu0 0.0
    %134 = vmatpush2.msra.mxu0 0.0
    %135 = vmatprep.subr.mxu0 0.0
    %136 = vmatpush2.msra.mxu0 0.0
    %137 = vmatprep.mubr.f32.mxu0 0.0
    %138 = vmatmul.mubr.f32.gmra.mxu0 %v71
    %v139 = vpop.f32.mrf.mxu0
    %v140 = vadd.f32 %v67, %v139
    %v141 = vpop.f32.mrf.mxu0
    %142 = vdwg.mxu0
    %v143 = vmax.f32 %v140, 0.0
    %v144 = vld [vmem:[#allocation5] sm:$0xff]
    %v145 = vld [vmem:[#allocation5 + $0x8] sm:$0xff]
    %v146 = vld [vmem:[#allocation5 + $0x10] sm:$0xff]
    %v147 = vld [vmem:[#allocation5 + $0x18] sm:$0xff]
    %v148 = vld [vmem:[%s1] sm:$0xff]
    %v149 = vld [vmem:[%s5] sm:$0xf]
    %vm150 = vcmask 31744
    %v152 = vsel %vm150, %v148, 0
    %vm154 = vcmask 1043456
    %v156 = vsel %vm154, %v149, 0
    %158 = vmatprep.subr.mxu0 0.0
    %159 = vmatpush1.msra.mxu0 0.0
    %160 = vmatprep.subr.mxu0 0.0
    %161 = vmatpush1.msra.mxu0 0.0
    %162 = vmatprep.subr.mxu0 0.0
    %163 = vmatpush1.msra.mxu0 0.0
    %164 = vmatprep.subr.mxu0 0.0
    %165 = vmatpush1.msra.mxu0 0.0
    %166 = vmatprep.subr.mxu0 0.0
    %167 = vmatpush1.msra.mxu0 0.0
    %168 = vmatprep.subr.mxu0 0.0
    %169 = vmatpush1.msra.mxu0 0.0
    %170 = vmatprep.subr.mxu0 0.0
    %171 = vmatpush1.msra.mxu0 0.0
    %172 = vmatprep.subr.mxu0 0.0
    %173 = vmatpush1.msra.mxu0 0.0
    %174 = vmatprep.subr.mxu0 0.0
    %175 = vmatpush1.msra.mxu0 0.0
    %176 = vmatprep.subr.mxu0 0.0
    %177 = vmatpush1.msra.mxu0 0.0
    %178 = vmatprep.subr.mxu0 0.0
    %179 = vmatpush1.msra.mxu0 0.0
    %180 = vmatprep.subr.mxu0 0.0
    %181 = vmatpush1.msra.mxu0 0.0
    %182 = vmatprep.subr.mxu0 0.0
    %183 = vmatpush1.msra.mxu0 0.0
    %184 = vmatprep.subr.mxu0 0.0
    %185 = vmatpush1.msra.mxu0 0.0
    %186 = vmatprep.subr.mxu0 0.0
    %187 = vmatpush1.msra.mxu0 0.0
    %188 = vmatprep.subr.mxu0 0.0
    %189 = vmatpush1.msra.mxu0 %v156
    %190 = vmatprep.subr.mxu0 0.0
    %191 = vmatpush2.msra.mxu0 0.0
    %192 = vmatprep.subr.mxu0 0.0
    %193 = vmatpush2.msra.mxu0 0.0
    %194 = vmatprep.subr.mxu0 0.0
    %195 = vmatpush2.msra.mxu0 0.0
    %196 = vmatprep.subr.mxu0 0.0
    %197 = vmatpush2.msra.mxu0 0.0
    %198 = vmatprep.subr.mxu0 0.0
    %199 = vmatpush2.msra.mxu0 0.0
    %200 = vmatprep.subr.mxu0 0.0
    %201 = vmatpush2.msra.mxu0 0.0
    %202 = vmatprep.subr.mxu0 0.0
    %203 = vmatpush2.msra.mxu0 0.0
    %204 = vmatprep.subr.mxu0 0.0
    %205 = vmatpush2.msra.mxu0 0.0
    %206 = vmatprep.subr.mxu0 0.0
    %207 = vmatpush2.msra.mxu0 0.0
    %208 = vmatprep.subr.mxu0 0.0
    %209 = vmatpush2.msra.mxu0 0.0
    %210 = vmatprep.subr.mxu0 0.0
    %211 = vmatpush2.msra.mxu0 0.0
    %212 = vmatprep.subr.mxu0 0.0
    %213 = vmatpush2.msra.mxu0 0.0
    %214 = vmatprep.subr.mxu0 0.0
    %215 = vmatpush2.msra.mxu0 0.0
    %216 = vmatprep.subr.mxu0 0.0
    %217 = vmatpush2.msra.mxu0 0.0
    %218 = vmatprep.subr.mxu0 0.0
    %219 = vmatpush2.msra.mxu0 0.0
    %220 = vmatprep.subr.mxu0 0.0
    %221 = vmatpush2.msra.mxu0 0.0
    %222 = vmatprep.mubr.f32.mxu0 0.0
    %223 = vmatmul.mubr.f32.gmra.mxu0 %v152
    %v224 = vpop.f32.mrf.mxu0
    %v225 = vadd.f32 0.0, %v224
    %v226 = vpop.f32.mrf.mxu0
    %227 = vdwg.mxu0
    %vm228 = vcmask 261120
    %v230 = vsel %vm228, %v143, 0
    %232 = vmatprep.subr.mxu0 0.0
    %233 = vmatpush1.msra.mxu0 0.0
    %234 = vmatprep.subr.mxu0 0.0
    %235 = vmatpush1.msra.mxu0 0.0
    %236 = vmatprep.subr.mxu0 0.0
    %237 = vmatpush1.msra.mxu0 0.0
    %238 = vmatprep.subr.mxu0 0.0
    %239 = vmatpush1.msra.mxu0 0.0
    %240 = vmatprep.subr.mxu0 0.0
    %241 = vmatpush1.msra.mxu0 0.0
    %242 = vmatprep.subr.mxu0 0.0
    %243 = vmatpush1.msra.mxu0 0.0
    %244 = vmatprep.subr.mxu0 0.0
    %245 = vmatpush1.msra.mxu0 0.0
    %246 = vmatprep.subr.mxu0 0.0
    %247 = vmatpush1.msra.mxu0 0.0
    %248 = vmatprep.subr.mxu0 0.0
    %249 = vmatpush1.msra.mxu0 0.0
    %250 = vmatprep.subr.mxu0 0.0
    %251 = vmatpush1.msra.mxu0 0.0
    %252 = vmatprep.subr.mxu0 0.0
    %253 = vmatpush1.msra.mxu0 0.0
    %254 = vmatprep.subr.mxu0 0.0
    %255 = vmatpush1.msra.mxu0 0.0
    %256 = vmatprep.subr.mxu0 0.0
    %257 = vmatpush1.msra.mxu0 %v147
    %258 = vmatprep.subr.mxu0 0.0
    %259 = vmatpush1.msra.mxu0 %v146
    %260 = vmatprep.subr.mxu0 0.0
    %261 = vmatpush1.msra.mxu0 %v145
    %262 = vmatprep.subr.mxu0 0.0
    %263 = vmatpush1.msra.mxu0 %v144
    %264 = vmatprep.subr.mxu0 0.0
    %265 = vmatpush2.msra.mxu0 0.0
    %266 = vmatprep.subr.mxu0 0.0
    %267 = vmatpush2.msra.mxu0 0.0
    %268 = vmatprep.subr.mxu0 0.0
    %269 = vmatpush2.msra.mxu0 0.0
    %270 = vmatprep.subr.mxu0 0.0
    %271 = vmatpush2.msra.mxu0 0.0
    %272 = vmatprep.subr.mxu0 0.0
    %273 = vmatpush2.msra.mxu0 0.0
    %274 = vmatprep.subr.mxu0 0.0
    %275 = vmatpush2.msra.mxu0 0.0
    %276 = vmatprep.subr.mxu0 0.0
    %277 = vmatpush2.msra.mxu0 0.0
    %278 = vmatprep.subr.mxu0 0.0
    %279 = vmatpush2.msra.mxu0 0.0
    %280 = vmatprep.subr.mxu0 0.0
    %281 = vmatpush2.msra.mxu0 0.0
    %282 = vmatprep.subr.mxu0 0.0
    %283 = vmatpush2.msra.mxu0 0.0
    %284 = vmatprep.subr.mxu0 0.0
    %285 = vmatpush2.msra.mxu0 0.0
    %286 = vmatprep.subr.mxu0 0.0
    %287 = vmatpush2.msra.mxu0 0.0
    %288 = vmatprep.subr.mxu0 0.0
    %289 = vmatpush2.msra.mxu0 0.0
    %290 = vmatprep.subr.mxu0 0.0
    %291 = vmatpush2.msra.mxu0 0.0
    %292 = vmatprep.subr.mxu0 0.0
    %293 = vmatpush2.msra.mxu0 0.0
    %294 = vmatprep.subr.mxu0 0.0
    %295 = vmatpush2.msra.mxu0 0.0
    %296 = vmatprep.mubr.f32.mxu0 0.0
    %297 = vmatmul.mubr.f32.gmra.mxu0 %v230
    %v298 = vpop.f32.mrf.mxu0
    %v299 = vadd.f32 %v225, %v298
    %v300 = vpop.f32.mrf.mxu0
    %301 = vdwg.mxu0
    %v302 = vld [vmem:[%s6] sm:$0x1]
    %v304 = vlaneseq
    %v305 = vshrl.u32 %v304, 7
    %v306 = vsub.s32 0, %v305
    %v307 = vrot.slane %v302, %v306
    %v309 = vadd.f32 %v299, %v307
    %v310 = vmax.f32 %v309, 0.0
    %v311 = vld [vmem:[%s7] sm:$0x1]
    %v313 = vlaneseq
    %v314 = vshrl.u32 %v313, 7
    %v315 = vsub.s32 0, %v314
    %v316 = vrot.slane %v311, %v315
    %v318 = vmul.f32 %v310, %v316
    %v319 = vsel %vm228, %v318, 0.0
    %320 = vadd.xlane.f32.xlu0 %v319
    %v321 = vpop.xlane.xlu0 %320
    %s322 = sld [smem:[#allocation2]]
    %v323 = vstv %s322
    %v324 = vadd.f32 %v321, %v323
    %vm325 = vcmask 7168
    %326 = vst.msk [vmem:[%s9] sm:$0xff] %vm325, %v324
    // Predicated region
    $region46: #{tpu_custom_call.1} parent=1 // pred_check
      _
    $region47: #{tpu_custom_call.1} parent=1 // pred_check_branch
      %328 = sbr.rel (0) target = $region49
    $region48: #{tpu_custom_call.1} parent=1 // pred_region
      _
    $region49: #{tpu_custom_call.1} parent=1 // pred_fallthru
      _
    // Predicated region
    $region50: #{tpu_custom_call.1} parent=1 // pred_check
      _
    $region51: #{tpu_custom_call.1} parent=1 // pred_check_branch
      %330 = sbr.rel (0) target = $region53
    $region52: #{tpu_custom_call.1} parent=1 // pred_region
      _
    $region53: #{tpu_custom_call.1} parent=1 // pred_fallthru
      _
    %331 = vsyncpa [#allocation4], 1
    %332 = vsyncpa [#allocation6], 1

</llo_original>
